<compile_context>
chip_gen: v7x
topology: tpu7x:2x2x1
jax: 0.10.0
libtpu: 0.0.40
codegen_flags: <defaults>
</compile_context>

<pallas_src>
import jax
import jax.numpy as jnp
from jax.experimental import pallas as pl
from jax.experimental.pallas import tpu as pltpu

NUM_CLASSES = 5
LANE = 128          # padded class dim (one full lane tile)
NEG_INF = -1e30     # bias value for the fake (padded) classes


def tm_loss_kernel(x_ref, wt_ref, b_ref, y_ref, invn_ref, loss_ref):
    # x_ref:    (TB, D)    f32   batch tile
    # wt_ref:   (D, 128)   f32   Linear weight, transposed + zero-padded classes
    # b_ref:    (1, 128)   f32   bias, padded classes set to -1e30
    # y_ref:    (TB, 1)    int32 labels, -1 marks padded (invalid) rows
    # invn_ref: (1, 1)     f32   1 / (true batch size), in SMEM
    # loss_ref: (1, 1)     f32   grid-resident accumulator -> final mean loss
    i = pl.program_id(0)

    @pl.when(i == 0)
    def _init():
        loss_ref[...] = jnp.zeros_like(loss_ref)

    # Linear layer on the MXU; lane-dense (TB, 128) logits block.
    logits = jnp.dot(x_ref[...], wt_ref[...],
                     preferred_element_type=jnp.float32) + b_ref[...]

    # Numerically-stable log-sum-exp (padded classes sit at -1e30 -> exp == 0).
    m = jnp.max(logits, axis=-1, keepdims=True)                       # (TB, 1)
    lse = m + jnp.log(jnp.sum(jnp.exp(logits - m), axis=-1, keepdims=True))

    # True-class logit via in-kernel label comparison (no one-hot input).
    y = y_ref[...]                                                    # (TB, 1)
    col = jax.lax.broadcasted_iota(jnp.int32, logits.shape, 1)        # (TB, 128)
    true_logit = jnp.sum(jnp.where(col == y, logits, 0.0),
                         axis=-1, keepdims=True)                      # (TB, 1)

    # Mask padded batch rows (label == -1).
    valid = (y >= 0).astype(jnp.float32)                              # (TB, 1)
    per_example = (lse - true_logit) * valid                          # (TB, 1)

    loss_ref[...] += jnp.sum(per_example, keepdims=True)              # (1, 1)

    @pl.when(i == pl.num_programs(0) - 1)
    def _finalize():
        loss_ref[...] = loss_ref[...] * invn_ref[0, 0]


def prepare_params(weight, bias):
    """One-time preprocessing: transpose + lane-pad the Linear parameters."""
    C, D = weight.shape
    wt_p = jnp.zeros((D, LANE), jnp.float32).at[:, :C].set(
        weight.T.astype(jnp.float32))
    b_p = jnp.full((1, LANE), NEG_INF, jnp.float32).at[0, :C].set(
        bias.astype(jnp.float32))
    return wt_p, b_p


def tm_forward(x, y, wt_padded, b_padded, tile_b=128):
    """x: (B, D) f32, y: (B,) int32 class indices; returns scalar mean CE loss."""
    B, D = x.shape
    n_tiles = pl.cdiv(B, tile_b)
    Bp = n_tiles * tile_b
    pad = Bp - B

    x_p = jnp.pad(x.astype(jnp.float32), ((0, pad), (0, 0)))
    y_p = jnp.pad(y.astype(jnp.int32), ((0, pad),),
                  constant_values=-1).reshape(Bp, 1)
    inv_n = jnp.full((1, 1), 1.0 / B, dtype=jnp.float32)

    loss = pl.pallas_call(
        tm_loss_kernel,
        out_shape=jax.ShapeDtypeStruct((1, 1), jnp.float32),
        grid=(n_tiles,),
        in_specs=[
            pl.BlockSpec((tile_b, D), lambda i: (i, 0)),        # x tile
            pl.BlockSpec((D, LANE), lambda i: (0, 0)),          # W^T (resident)
            pl.BlockSpec((1, LANE), lambda i: (0, 0)),          # bias (resident)
            pl.BlockSpec((tile_b, 1), lambda i: (i, 0)),        # labels tile
            pl.BlockSpec(memory_space=pltpu.MemorySpace.SMEM),  # 1/B scalar
        ],
        out_specs=pl.BlockSpec((1, 1), lambda i: (0, 0)),       # accumulator
        compiler_params=pltpu.CompilerParams(
            dimension_semantics=("arbitrary",),   # sequential reduction over B tiles
        ),
    )(x_p, wt_padded, b_padded, y_p, inv_n)
    return loss[0, 0]


if __name__ == "__main__":
    key = jax.random.PRNGKey(0)
    k_x, k_y, k_w, k_b = jax.random.split(key, 4)

    # Batch deliberately NOT a multiple of the tile -> exercises the ragged-tile
    # masking and the multi-step accumulator (2 grid steps at tile_b=128).
    B, D = 200, 32

    x = jax.random.normal(k_x, (B, D), dtype=jnp.float32)
    y = jax.random.randint(k_y, (B,), 0, NUM_CLASSES, dtype=jnp.int32)

    # Parameter init mimicking torch.nn.Linear's uniform(-1/sqrt(D), 1/sqrt(D))
    bound = 1.0 / jnp.sqrt(jnp.float32(D))
    weight = jax.random.uniform(k_w, (NUM_CLASSES, D), minval=-bound,
                                maxval=bound, dtype=jnp.float32)
    bias = jax.random.uniform(k_b, (NUM_CLASSES,), minval=-bound,
                              maxval=bound, dtype=jnp.float32)

    wt_p, b_p = prepare_params(weight, bias)   # one-time pad + transpose
    loss = tm_forward(x, y, wt_p, b_p, tile_b=128)
    jax.block_until_ready(loss)

    # Pure-JAX reference (same math as torch.nn.functional.cross_entropy, mean)
    logits_ref = x @ weight.T + bias
    logp = jax.nn.log_softmax(logits_ref, axis=-1)
    ref = -jnp.mean(logp[jnp.arange(B), y])
    assert jnp.allclose(loss, ref, atol=1e-4, rtol=1e-4), (loss, ref)

    print("KERNEL_OK")
</pallas_src>

<mosaic_0001>
module attributes {stable_mosaic.version = 11 : i64} {
  func.func @tm_loss_kernel(%arg0: i32, %arg1: memref<128x32xf32, #tpu.memory_space<vmem>>, %arg2: memref<32x128xf32, #tpu.memory_space<vmem>>, %arg3: memref<1x128xf32, #tpu.memory_space<vmem>>, %arg4: memref<128x1xi32, #tpu.memory_space<vmem>>, %arg5: memref<1x1xf32, #tpu.memory_space<smem>>, %arg6: memref<1x1xf32, #tpu.memory_space<vmem>>) attributes {dimension_semantics = [#tpu.dimension_semantics<arbitrary>], iteration_bounds = array<i64: 2>, scalar_prefetch = 0 : i64, scratch_operands = 0 : i64, tpu.core_type = #tpu.core_type<tc>, window_params = [{transform_indices = @transform_0, window_bounds = array<i64: 128, 32>}, {pipeline_mode = #tpu.pipeline_mode<synchronous>, transform_indices = @transform_1, window_bounds = array<i64: 32, 128>}, {pipeline_mode = #tpu.pipeline_mode<synchronous>, transform_indices = @transform_2, window_bounds = array<i64: 1, 128>}, {transform_indices = @transform_3, window_bounds = array<i64: 128, 1>}, {transform_indices = @transform_4, window_bounds = array<i64: 1, 1>}, {pipeline_mode = #tpu.pipeline_mode<synchronous>, transform_indices = @transform_5, window_bounds = array<i64: 1, 1>}]} {
    %c0_i32 = arith.constant 0 : i32
    %0 = arith.cmpi eq, %arg0, %c0_i32 : i32
    %1 = arith.extui %0 : i1 to i32
    %c0_i32_0 = arith.constant 0 : i32
    %2 = arith.cmpi ne, %1, %c0_i32_0 : i32
    scf.if %2 {
      %cst_19 = arith.constant 0.000000e+00 : f32
      %43 = vector.broadcast %cst_19 : f32 to vector<1x1xf32>
      %c0_20 = arith.constant 0 : index
      %c0_21 = arith.constant 0 : index
      %44 = vector.load %arg6[%c0_20, %c0_21] : memref<1x1xf32, #tpu.memory_space<vmem>>, vector<1x1xf32>
      tpu.vector_store %arg6[%c0_20, %c0_21], %43 {strides = array<i32>} : memref<1x1xf32, #tpu.memory_space<vmem>>, vector<1x1xf32>,
    } else {
    }
    %c0 = arith.constant 0 : index
    %c0_1 = arith.constant 0 : index
    %3 = vector.load %arg1[%c0, %c0_1] : memref<128x32xf32, #tpu.memory_space<vmem>>, vector<128x32xf32>
    %c0_2 = arith.constant 0 : index
    %c0_3 = arith.constant 0 : index
    %4 = vector.load %arg2[%c0_2, %c0_3] : memref<32x128xf32, #tpu.memory_space<vmem>>, vector<32x128xf32>
    %cst = arith.constant dense<0.000000e+00> : vector<128x128xf32>
    %5 = tpu.matmul %3, %4, %cst {dimension_numbers = #tpu.dot_dimension_numbers<[1], [0], [0], [1], [0, 0, 1, 1], [], []>} : vector<128x32xf32>, vector<32x128xf32>, vector<128x128xf32> -> vector<128x128xf32>
    %c0_4 = arith.constant 0 : index
    %c0_5 = arith.constant 0 : index
    %6 = vector.load %arg3[%c0_4, %c0_5] : memref<1x128xf32, #tpu.memory_space<vmem>>, vector<1x128xf32>
    %7 = vector.broadcast %6 : vector<1x128xf32> to vector<128x128xf32>
    %8 = arith.addf %5, %7 : vector<128x128xf32>
    %cst_6 = arith.constant dense<0xFF800000> : vector<128xf32>
    %9 = vector.multi_reduction <maximumf>, %8, %cst_6 [1] : vector<128x128xf32> to vector<128xf32>
    %10 = vector.shape_cast %9 : vector<128xf32> to vector<128x1xf32>
    %11 = vector.broadcast %10 : vector<128x1xf32> to vector<128x128xf32>
    %12 = arith.subf %8, %11 : vector<128x128xf32>
    %13 = math.exp %12 : vector<128x128xf32>
    %cst_7 = arith.constant dense<0.000000e+00> : vector<128xf32>
    %14 = vector.multi_reduction <add>, %13, %cst_7 [1] : vector<128x128xf32> to vector<128xf32>
    %15 = vector.shape_cast %14 : vector<128xf32> to vector<128x1xf32>
    %16 = math.log %15 : vector<128x1xf32>
    %17 = arith.addf %10, %16 : vector<128x1xf32>
    %c0_8 = arith.constant 0 : index
    %c0_9 = arith.constant 0 : index
    %18 = vector.load %arg4[%c0_8, %c0_9] : memref<128x1xi32, #tpu.memory_space<vmem>>, vector<128x1xi32>
    %19 = tpu.iota {dimensions = array<i32: 1>} : vector<128x128xi32>
    %20 = vector.broadcast %18 : vector<128x1xi32> to vector<128x128xi32>
    %21 = arith.cmpi eq, %19, %20 : vector<128x128xi32>
    %cst_10 = arith.constant 0.000000e+00 : f32
    %22 = vector.broadcast %cst_10 : f32 to vector<128x128xf32>
    %23 = arith.select %21, %8, %22 : vector<128x128xi1>, vector<128x128xf32>
    %cst_11 = arith.constant dense<0.000000e+00> : vector<128xf32>
    %24 = vector.multi_reduction <add>, %23, %cst_11 [1] : vector<128x128xf32> to vector<128xf32>
    %25 = vector.shape_cast %24 : vector<128xf32> to vector<128x1xf32>
    %c0_i32_12 = arith.constant 0 : i32
    %26 = vector.broadcast %c0_i32_12 : i32 to vector<128x1xi32>
    %27 = arith.cmpi sge, %18, %26 : vector<128x1xi32>
    %28 = arith.extui %27 : vector<128x1xi1> to vector<128x1xi32>
    %29 = arith.sitofp %28 : vector<128x1xi32> to vector<128x1xf32>
    %30 = arith.subf %17, %25 : vector<128x1xf32>
    %31 = arith.mulf %30, %29 : vector<128x1xf32>
    %c0_13 = arith.constant 0 : index
    %c0_14 = arith.constant 0 : index
    %32 = vector.load %arg6[%c0_13, %c0_14] : memref<1x1xf32, #tpu.memory_space<vmem>>, vector<1x1xf32>
    %33 = vector.shape_cast %31 : vector<128x1xf32> to vector<1x128x1xf32>
    %cst_15 = arith.constant dense<0.000000e+00> : vector<1xf32>
    %34 = vector.multi_reduction <add>, %33, %cst_15 [1, 2] : vector<1x128x1xf32> to vector<1xf32>
    %35 = vector.shape_cast %34 : vector<1xf32> to vector<1x1x1xf32>
    %36 = vector.extract %35[0, 0, 0] : f32 from vector<1x1x1xf32>
    %37 = vector.broadcast %36 : f32 to vector<1x1xf32>
    %38 = arith.addf %32, %37 : vector<1x1xf32>
    %c0_16 = arith.constant 0 : index
    %c0_17 = arith.constant 0 : index
    %39 = vector.load %arg6[%c0_16, %c0_17] : memref<1x1xf32, #tpu.memory_space<vmem>>, vector<1x1xf32>
    tpu.vector_store %arg6[%c0_16, %c0_17], %38 {strides = array<i32>} : memref<1x1xf32, #tpu.memory_space<vmem>>, vector<1x1xf32>,
    %c1_i32 = arith.constant 1 : i32
    %40 = arith.cmpi eq, %arg0, %c1_i32 : i32
    %41 = arith.extui %40 : i1 to i32
    %c0_i32_18 = arith.constant 0 : i32
    %42 = arith.cmpi ne, %41, %c0_i32_18 : i32
    scf.if %42 {
      %c0_19 = arith.constant 0 : index
      %c0_20 = arith.constant 0 : index
      %43 = vector.load %arg6[%c0_19, %c0_20] : memref<1x1xf32, #tpu.memory_space<vmem>>, vector<1x1xf32>
      %c0_21 = arith.constant 0 : index
      %c0_22 = arith.constant 0 : index
      %44 = memref.load %arg5[%c0_21, %c0_22] : memref<1x1xf32, #tpu.memory_space<smem>>
      %45 = vector.broadcast %44 : f32 to vector<1x1xf32>
      %46 = arith.mulf %43, %45 : vector<1x1xf32>
      %c0_23 = arith.constant 0 : index
      %c0_24 = arith.constant 0 : index
      %47 = vector.load %arg6[%c0_23, %c0_24] : memref<1x1xf32, #tpu.memory_space<vmem>>, vector<1x1xf32>
      tpu.vector_store %arg6[%c0_23, %c0_24], %46 {strides = array<i32>} : memref<1x1xf32, #tpu.memory_space<vmem>>, vector<1x1xf32>,
    } else {
    }
    return
  }
  func.func @transform_0(%arg0: i32) -> (i32, i32) {
    %c0_i32 = arith.constant 0 : i32
    %c0_i32_0 = arith.constant 0 : i32
    return %arg0, %c0_i32 : i32, i32
  }
  func.func @transform_1(%arg0: i32) -> (i32, i32) {
    %c0_i32 = arith.constant 0 : i32
    %c0_i32_0 = arith.constant 0 : i32
    %c0_i32_1 = arith.constant 0 : i32
    return %c0_i32, %c0_i32_0 : i32, i32
  }
  func.func @transform_2(%arg0: i32) -> (i32, i32) {
    %c0_i32 = arith.constant 0 : i32
    %c0_i32_0 = arith.constant 0 : i32
    %c0_i32_1 = arith.constant 0 : i32
    return %c0_i32, %c0_i32_0 : i32, i32
  }
  func.func @transform_3(%arg0: i32) -> (i32, i32) {
    %c0_i32 = arith.constant 0 : i32
    %c0_i32_0 = arith.constant 0 : i32
    return %arg0, %c0_i32 : i32, i32
  }
  func.func @transform_4(%arg0: i32) -> (i32, i32) {
    %c0_i32 = arith.constant 0 : i32
    %c0_i32_0 = arith.constant 0 : i32
    %c0_i32_1 = arith.constant 0 : i32
    return %c0_i32, %c0_i32_0 : i32, i32
  }
  func.func @transform_5(%arg0: i32) -> (i32, i32) {
    %c0_i32 = arith.constant 0 : i32
    %c0_i32_0 = arith.constant 0 : i32
    %c0_i32_1 = arith.constant 0 : i32
    return %c0_i32, %c0_i32_0 : i32, i32
  }
}

</mosaic_0001>

<llo_original>
// kernel: tpu_custom_call.1
$region0: #{tpu_custom_call.1}
  #allocation0 [shape = 'u32[]', space=smem, size = 0x4, offset = 0x4, fixed_abs, tag = 'smem constant byte address 0x4 - core index']
  #allocation1 [shape = 'u32[144,128]{1,0:T(1,128)}', space=vmem, size = 0x12000, scoped, tag = 'internal scratch']
  #allocation2 [shape = 'f32[1,1]{1,0:T(1,128)S(6)}', space=smem, size = 0x200, scoped, tag = 'scoped memory for tpu_custom_call.1']
  %s0 = inlined_call_operand.vmem [shape: f32[256,32], index: 0, kind: input, shape index: {}]
  %s1 = inlined_call_operand.vmem [shape: f32[32,128], index: 1, kind: input, shape index: {}]
  %s2 = inlined_call_operand.vmem [shape: f32[1,128], index: 2, kind: input, shape index: {}]
  %s3 = inlined_call_operand.vmem [shape: s32[256,1], index: 3, kind: input, shape index: {}]
  %s4 = inlined_call_operand.<no memory space> [shape: f32[1,1], index: 4, kind: input, shape index: {}]
  %s5 = inlined_call_operand.hbm [shape: f32[1,1], index: 5, kind: output, shape index: {}]
  %s6 = sld [smem:[#allocation0]]
  $region61: #{tpu_custom_call.1} parent=0
    _
  %s8 = ssub.s32 1, %s6
  %s9 = scalar_select 0, %s8, %s6
  %10 = sst [smem:[#allocation2]] %s4
  $region1: #{tpu_custom_call.1} parent=0
    #allocation3 [shape = 'u8[512]{0}', space=vmem, size = 0x400, scoped, tag = 'output window, operand 0, single buffered']
    #allocation4 [shape = 's32[2]{0}', space=sflag, size = 0x8, scoped, tag = 'scoped memory for tpu_custom_call.1']
    %11 = vsyncpa [#allocation4], 0
    loop: start=0, step=1, limit=4
    $region2: #{tpu_custom_call.1} parent=1 // loop_pre_header
      _
    $region3: #{tpu_custom_call.1} parent=1 // loop_header
      %s13 = sphi 0, %s17
      %p14 = scmp.ge.s32.totalorder %s13, 4
      %s23 = sphi 0, %s25
      %s26 = sphi 0, %s23
      %s27 = sphi 0, %s26
      %s43 = sphi 0, %s27
      %s47 = sphi 0, %s47
      %s49 = sphi 0, %s47
      %s50 = sphi 0, %s49
      %s64 = sphi 0, %s50
      %s68 = sphi 0, %s68
      %s70 = sphi 0, %s68
      %s71 = sphi 0, %s70
      %s85 = sphi 0, %s71
      %s91 = sphi 0, %s93
      %s94 = sphi 0, %s91
      %s95 = sphi 0, %s94
      %s111 = sphi 0, %s95
      %s115 = sphi 0, %s115
      %s117 = sphi 0, %s115
      %s118 = sphi 0, %s117
      %s132 = sphi 0, %s118
      %s136 = sphi 0, %s136
      %s138 = sphi 0, %s136
      %s139 = sphi 0, %s138
      %s153 = sphi 0, %s139
    $region4: #{tpu_custom_call.1} parent=1 // loop_header_branch
      %16 = sbr.rel (%p14) target = $region8
    $region5: #{tpu_custom_call.1} parent=1 // loop_body
      %s18 = ssub.s32 %s13, 1
      %s19 = ssub.s32 %s13, 2
      %s20 = sadd.s32 %s13, 1
      %s21 = ssub.s32 %s13, %s20
      %p22 = scmp.eq.s32.totalorder %s21, 0
      %s24 = sadd.s32 %s23, 1
      %s25 = scalar_select %p22, %s23, %s24
      %p28 = pneg %p22
      %p29 = scmp.eq.s32.totalorder %s13, 1
      %p30 = por %p28, %p29
      %p31 = scmp.ne.s32.totalorder %s23, %s26
      %p32 = scmp.eq.s32.totalorder %s13, 0
      %p33 = por %p31, %p32
      %p34 = scmp.ne.s32.totalorder %s23, %s26
      %p35 = scmp.eq.s32.totalorder %s18, 1
      %p36 = por %p34, %p35
      %p37 = scmp.ne.s32.totalorder %s26, %s27
      %p38 = scmp.eq.s32.totalorder %s18, 0
      %p39 = por %p37, %p38
      %p40 = scmp.ne.s32.totalorder %s26, %s27
      %p41 = scmp.eq.s32.totalorder %s19, 1
      %p42 = por %p40, %p41
      %p44 = scmp.ne.s32.totalorder %s27, %s43
      %p45 = scmp.eq.s32.totalorder %s19, 0
      %p46 = por %p44, %p45
      %s48 = sadd.s32 %s47, 1
      %p51 = scmp.eq.s32.totalorder %s13, 1
      %p52 = scmp.ne.s32.totalorder %s47, %s49
      %p53 = scmp.eq.s32.totalorder %s13, 0
      %p54 = por %p52, %p53
      %p55 = scmp.ne.s32.totalorder %s47, %s49
      %p56 = scmp.eq.s32.totalorder %s18, 1
      %p57 = por %p55, %p56
      %p58 = scmp.ne.s32.totalorder %s49, %s50
      %p59 = scmp.eq.s32.totalorder %s18, 0
      %p60 = por %p58, %p59
      %p61 = scmp.ne.s32.totalorder %s49, %s50
      %p62 = scmp.eq.s32.totalorder %s19, 1
      %p63 = por %p61, %p62
      %p65 = scmp.ne.s32.totalorder %s50, %s64
      %p66 = scmp.eq.s32.totalorder %s19, 0
      %p67 = por %p65, %p66
      %s69 = sadd.s32 %s68, 1
      %p72 = scmp.eq.s32.totalorder %s13, 1
      %p73 = scmp.ne.s32.totalorder %s68, %s70
      %p74 = scmp.eq.s32.totalorder %s13, 0
      %p75 = por %p73, %p74
      %p76 = scmp.ne.s32.totalorder %s68, %s70
      %p77 = scmp.eq.s32.totalorder %s18, 1
      %p78 = por %p76, %p77
      %p79 = scmp.ne.s32.totalorder %s70, %s71
      %p80 = scmp.eq.s32.totalorder %s18, 0
      %p81 = por %p79, %p80
      %p82 = scmp.ne.s32.totalorder %s70, %s71
      %p83 = scmp.eq.s32.totalorder %s19, 1
      %p84 = por %p82, %p83
      %p86 = scmp.ne.s32.totalorder %s71, %s85
      %p87 = scmp.eq.s32.totalorder %s19, 0
      %p88 = por %p86, %p87
      %s89 = ssub.s32 %s13, %s20
      %p90 = scmp.eq.s32.totalorder %s89, 0
      %s92 = sadd.s32 %s91, 1
      %s93 = scalar_select %p90, %s91, %s92
      %p96 = pneg %p90
      %p97 = scmp.eq.s32.totalorder %s13, 1
      %p98 = por %p96, %p97
      %p99 = scmp.ne.s32.totalorder %s91, %s94
      %p100 = scmp.eq.s32.totalorder %s13, 0
      %p101 = por %p99, %p100
      %p102 = scmp.ne.s32.totalorder %s91, %s94
      %p103 = scmp.eq.s32.totalorder %s18, 1
      %p104 = por %p102, %p103
      %p105 = scmp.ne.s32.totalorder %s94, %s95
      %p106 = scmp.eq.s32.totalorder %s18, 0
      %p107 = por %p105, %p106
      %p108 = scmp.ne.s32.totalorder %s94, %s95
      %p109 = scmp.eq.s32.totalorder %s19, 1
      %p110 = por %p108, %p109
      %p112 = scmp.ne.s32.totalorder %s95, %s111
      %p113 = scmp.eq.s32.totalorder %s19, 0
      %p114 = por %p112, %p113
      %s116 = sadd.s32 %s115, 1
      %p119 = scmp.eq.s32.totalorder %s13, 1
      %p120 = scmp.ne.s32.totalorder %s115, %s117
      %p121 = scmp.eq.s32.totalorder %s13, 0
      %p122 = por %p120, %p121
      %p123 = scmp.ne.s32.totalorder %s115, %s117
      %p124 = scmp.eq.s32.totalorder %s18, 1
      %p125 = por %p123, %p124
      %p126 = scmp.ne.s32.totalorder %s117, %s118
      %p127 = scmp.eq.s32.totalorder %s18, 0
      %p128 = por %p126, %p127
      %p129 = scmp.ne.s32.totalorder %s117, %s118
      %p130 = scmp.eq.s32.totalorder %s19, 1
      %p131 = por %p129, %p130
      %p133 = scmp.ne.s32.totalorder %s118, %s132
      %p134 = scmp.eq.s32.totalorder %s19, 0
      %p135 = por %p133, %p134
      %s137 = sadd.s32 %s136, 1
      %p140 = scmp.eq.s32.totalorder %s13, 1
      %p141 = scmp.ne.s32.totalorder %s136, %s138
      %p142 = scmp.eq.s32.totalorder %s13, 0
      %p143 = por %p141, %p142
      %p144 = scmp.ne.s32.totalorder %s136, %s138
      %p145 = scmp.eq.s32.totalorder %s18, 1
      %p146 = por %p144, %p145
      %p147 = scmp.ne.s32.totalorder %s138, %s139
      %p148 = scmp.eq.s32.totalorder %s18, 0
      %p149 = por %p147, %p148
      %p150 = scmp.ne.s32.totalorder %s138, %s139
      %p151 = scmp.eq.s32.totalorder %s19, 1
      %p152 = por %p150, %p151
      %p154 = scmp.ne.s32.totalorder %s139, %s153
      %p155 = scmp.eq.s32.totalorder %s19, 0
      %p156 = por %p154, %p155
      %p157 = scmp.le.s32.totalorder 1, %s13
      %p158 = scmp.lt.s32.totalorder %s13, 3
      %p159 = pnand %p157, %p158
      %p160 = pneg %p159
      // Predicated region
      $region9: #{tpu_custom_call.1} parent=5 // pred_check
        _
      $region10: #{tpu_custom_call.1} parent=5 // pred_check_branch
        %162 = sbr.rel (%p159) target = $region12
      $region11: #{tpu_custom_call.1} parent=5 // pred_region
        %s163 = ssub.s32 %s13, 1
        // Predicated region
        $region13: #{tpu_custom_call.1} parent=11 // pred_check
          %p164 = pneg %p60
        $region14: #{tpu_custom_call.1} parent=11 // pred_check_branch
          %166 = sbr.rel (%p164) target = $region16
        $region15: #{tpu_custom_call.1} parent=11 // pred_region
          _
        $region16: #{tpu_custom_call.1} parent=11 // pred_fallthru
          _
        // Predicated region
        $region17: #{tpu_custom_call.1} parent=11 // pred_check
          %p167 = pneg %p81
        $region18: #{tpu_custom_call.1} parent=11 // pred_check_branch
          %169 = sbr.rel (%p167) target = $region20
        $region19: #{tpu_custom_call.1} parent=11 // pred_region
          _
        $region20: #{tpu_custom_call.1} parent=11 // pred_fallthru
          _
        // Predicated region
        $region21: #{tpu_custom_call.1} parent=11 // pred_check
          %p170 = pneg %p128
        $region22: #{tpu_custom_call.1} parent=11 // pred_check_branch
          %172 = sbr.rel (%p170) target = $region24
        $region23: #{tpu_custom_call.1} parent=11 // pred_region
          _
        $region24: #{tpu_custom_call.1} parent=11 // pred_fallthru
          _
      $region12: #{tpu_custom_call.1} parent=5 // pred_fallthru
        _
      %p173 = scmp.lt.s32.totalorder %s13, 2
      // Predicated region
      $region25: #{tpu_custom_call.1} parent=5 // pred_check
        %p174 = pneg %p173
      $region26: #{tpu_custom_call.1} parent=5 // pred_check_branch
        %176 = sbr.rel (%p174) target = $region28
      $region27: #{tpu_custom_call.1} parent=5 // pred_region
        // Predicated region
        $region29: #{tpu_custom_call.1} parent=27 // pred_check
          %p177 = pneg %p33
        $region30: #{tpu_custom_call.1} parent=27 // pred_check_branch
          %179 = sbr.rel (%p177) target = $region32
        $region31: #{tpu_custom_call.1} parent=27 // pred_region
          %s180 = smul.u32 16, %s13
          %p181 = scmp.lt.s32.totalorder %s180, 31
          %s182 = scalar_select %p181, %s180, 31
          %s183 = smul.addr %s182, 8
          %s184 = scalar_lea.vmem %s0, %s183
          %s185 = smul.u32 16, %s13
        $region32: #{tpu_custom_call.1} parent=27 // pred_fallthru
          _
        // Predicated region
        $region33: #{tpu_custom_call.1} parent=27 // pred_check
          %p186 = pneg %p101
        $region34: #{tpu_custom_call.1} parent=27 // pred_check_branch
          %188 = sbr.rel (%p186) target = $region36
        $region35: #{tpu_custom_call.1} parent=27 // pred_region
          %s189 = smul.u32 16, %s13
          %p190 = scmp.lt.s32.totalorder %s189, 31
          %s191 = scalar_select %p190, %s189, 31
          %s192 = smul.addr %s191, 8
          %s193 = scalar_lea.vmem %s3, %s192
          %s194 = smul.u32 16, %s13
        $region36: #{tpu_custom_call.1} parent=27 // pred_fallthru
          _
      $region28: #{tpu_custom_call.1} parent=5 // pred_fallthru
        _
      %p195 = scmp.le.s32.totalorder 1, %s13
      %p196 = scmp.lt.s32.totalorder %s13, 3
      %p197 = pnand %p195, %p196
      %p198 = pneg %p197
      // Predicated region
      $region37: #{tpu_custom_call.1} parent=5 // pred_check
        _
      $region38: #{tpu_custom_call.1} parent=5 // pred_check_branch
        %200 = sbr.rel (%p197) target = $region40
      $region39: #{tpu_custom_call.1} parent=5 // pred_region
        %s201 = ssub.s32 %s13, 1
        %s202 = smul.u32 16, %s18
        %p203 = scmp.lt.s32.totalorder %s202, 31
        %s204 = scalar_select %p203, %s202, 31
        %s205 = smul.addr %s204, 8
        %s206 = scalar_lea.vmem %s0, %s205
        %p207 = pneg %p39
        %p208 = pneg %p36
        %p209 = pneg %p60
        %p210 = pneg %p57
        %p211 = pneg %p81
        %p212 = pneg %p78
        %s213 = smul.u32 16, %s18
        %p214 = scmp.lt.s32.totalorder %s213, 31
        %s215 = scalar_select %p214, %s213, 31
        %s216 = smul.addr %s215, 8
        %s217 = scalar_lea.vmem %s3, %s216
        %p218 = pneg %p107
        %p219 = pneg %p104
        %p220 = pneg %p128
        %p221 = pneg %p125
        %p222 = pneg %p149
        %p223 = pneg %p146
        %s224 = smul.u32 16, %s18
        %p225 = scmp.lt.s32.totalorder %s224, 31
        %s226 = scalar_select %p225, %s224, 31
        %s227 = smul.addr %s226, 8
        %s228 = scalar_lea.vmem %s0, %s227
        %s229 = smul.u32 16, %s18
        %s230 = smul.u32 16, %s18
        %p231 = scmp.lt.s32.totalorder %s230, 31
        %s232 = scalar_select %p231, %s230, 31
        %s233 = smul.addr %s232, 8
        %s234 = scalar_lea.vmem %s3, %s233
        %s235 = smul.u32 16, %s18
        %p236 = scmp.eq.s32.totalorder %s18, 0
        // Predicated region
        $region41: #{tpu_custom_call.1} parent=39 // pred_check
          %p237 = pneg %p236
        $region42: #{tpu_custom_call.1} parent=39 // pred_check_branch
          %239 = sbr.rel (%p237) target = $region44
        $region43: #{tpu_custom_call.1} parent=39 // pred_region
          %vm240 = vcmask 0
          %241 = vst.msk [vmem:[#allocation3] sm:$0x1] %vm240, 0.0
        $region44: #{tpu_custom_call.1} parent=39 // pred_fallthru
          _
        %v242 = vld [vmem:[%s228] sm:$0xff]
        %v243 = vld [vmem:[%s228 + $0x8] sm:$0xff]
        %v244 = vld [vmem:[%s228 + $0x10] sm:$0xff]
        %v245 = vld [vmem:[%s228 + $0x18] sm:$0xff]
        %v246 = vld [vmem:[%s228 + $0x20] sm:$0xff]
        %v247 = vld [vmem:[%s228 + $0x28] sm:$0xff]
        %v248 = vld [vmem:[%s228 + $0x30] sm:$0xff]
        %v249 = vld [vmem:[%s228 + $0x38] sm:$0xff]
        %v250 = vld [vmem:[%s228 + $0x40] sm:$0xff]
        %v251 = vld [vmem:[%s228 + $0x48] sm:$0xff]
        %v252 = vld [vmem:[%s228 + $0x50] sm:$0xff]
        %v253 = vld [vmem:[%s228 + $0x58] sm:$0xff]
        %v254 = vld [vmem:[%s228 + $0x60] sm:$0xff]
        %v255 = vld [vmem:[%s228 + $0x68] sm:$0xff]
        %v256 = vld [vmem:[%s228 + $0x70] sm:$0xff]
        %v257 = vld [vmem:[%s228 + $0x78] sm:$0xff]
        %v258 = vld [vmem:[%s1] sm:$0xff]
        %v259 = vld [vmem:[%s1 + $0x8] sm:$0xff]
        %v260 = vld [vmem:[%s1 + $0x10] sm:$0xff]
        %v261 = vld [vmem:[%s1 + $0x18] sm:$0xff]
        %v262 = vld [vmem:[%s2] sm:$0x1]
        %v264 = vlaneseq
        %v265 = vshrl.u32 %v264, 7
        %v266 = vsub.s32 0, %v265
        %v267 = vrot.slane %v262, %v266
        %vm269 = vcmask 261120
        %v271 = vsel %vm269, %v242, 0
        %v274 = vsel %vm269, %v243, 0
        %v277 = vsel %vm269, %v244, 0
        %v280 = vsel %vm269, %v245, 0
        %v283 = vsel %vm269, %v246, 0
        %v286 = vsel %vm269, %v247, 0
        %v289 = vsel %vm269, %v248, 0
        %v292 = vsel %vm269, %v249, 0
        %v295 = vsel %vm269, %v250, 0
        %v298 = vsel %vm269, %v251, 0
        %v301 = vsel %vm269, %v252, 0
        %v304 = vsel %vm269, %v253, 0
        %v307 = vsel %vm269, %v254, 0
        %v310 = vsel %vm269, %v255, 0
        %v313 = vsel %vm269, %v256, 0
        %v316 = vsel %vm269, %v257, 0
        %318 = vmatprep.subr.mxu0 0.0
        %319 = vmatpush1.msra.mxu0 %v258
        %320 = vmatprep.subr.mxu0 0.0
        %321 = vmatpush1.msra.mxu0 %v259
        %322 = vmatprep.subr.mxu0 0.0
        %323 = vmatpush1.msra.mxu0 %v260
        %324 = vmatprep.subr.mxu0 0.0
        %325 = vmatpush1.msra.mxu0 %v261
        %326 = vmatprep.subr.mxu0 0.0
        %327 = vmatpush1.msra.mxu0 0.0
        %328 = vmatprep.subr.mxu0 0.0
        %329 = vmatpush1.msra.mxu0 0.0
        %330 = vmatprep.subr.mxu0 0.0
        %331 = vmatpush1.msra.mxu0 0.0
        %332 = vmatprep.subr.mxu0 0.0
        %333 = vmatpush1.msra.mxu0 0.0
        %334 = vmatprep.subr.mxu0 0.0
        %335 = vmatpush1.msra.mxu0 0.0
        %336 = vmatprep.subr.mxu0 0.0
        %337 = vmatpush1.msra.mxu0 0.0
        %338 = vmatprep.subr.mxu0 0.0
        %339 = vmatpush1.msra.mxu0 0.0
        %340 = vmatprep.subr.mxu0 0.0
        %341 = vmatpush1.msra.mxu0 0.0
        %342 = vmatprep.subr.mxu0 0.0
        %343 = vmatpush1.msra.mxu0 0.0
        %344 = vmatprep.subr.mxu0 0.0
        %345 = vmatpush1.msra.mxu0 0.0
        %346 = vmatprep.subr.mxu0 0.0
        %347 = vmatpush1.msra.mxu0 0.0
        %348 = vmatprep.subr.mxu0 0.0
        %349 = vmatpush1.msra.mxu0 0.0
        %350 = vmatprep.subr.mxu0 0.0
        %351 = vmatpush1.msra.mxu0 0.0
        %352 = vmatprep.subr.mxu0 0.0
        %353 = vmatpush1.msra.mxu0 0.0
        %354 = vmatprep.subr.mxu0 0.0
        %355 = vmatpush1.msra.mxu0 0.0
        %356 = vmatprep.subr.mxu0 0.0
        %357 = vmatpush1.msra.mxu0 0.0
        %358 = vmatprep.subr.mxu0 0.0
        %359 = vmatpush1.msra.mxu0 0.0
        %360 = vmatprep.subr.mxu0 0.0
        %361 = vmatpush1.msra.mxu0 0.0
        %362 = vmatprep.subr.mxu0 0.0
        %363 = vmatpush1.msra.mxu0 0.0
        %364 = vmatprep.subr.mxu0 0.0
        %365 = vmatpush1.msra.mxu0 0.0
        %366 = vmatprep.subr.mxu0 0.0
        %367 = vmatpush1.msra.mxu0 0.0
        %368 = vmatprep.subr.mxu0 0.0
        %369 = vmatpush1.msra.mxu0 0.0
        %370 = vmatprep.subr.mxu0 0.0
        %371 = vmatpush1.msra.mxu0 0.0
        %372 = vmatprep.subr.mxu0 0.0
        %373 = vmatpush1.msra.mxu0 0.0
        %374 = vmatprep.subr.mxu0 0.0
        %375 = vmatpush1.msra.mxu0 0.0
        %376 = vmatprep.subr.mxu0 0.0
        %377 = vmatpush1.msra.mxu0 0.0
        %378 = vmatprep.subr.mxu0 0.0
        %379 = vmatpush1.msra.mxu0 0.0
        %380 = vmatprep.subr.mxu0 0.0
        %381 = vmatpush1.msra.mxu0 0.0
        %382 = vmatprep.mubr.f32.mxu0 0.0
        %383 = vmatmul.mubr.f32.gmra.mrb[0].mxu0 %v271
        %v384 = vpop.f32.mrb[0].mxu0
        %v385 = vadd.f32 %v267, %v384
        %v386 = vpop.f32.mrb[0].mxu0
        %387 = vmatprep.mubr.f32.mxu0 0.0
        %388 = vmatmul.mubr.f32.gmra.mrb[0].mxu0 %v274
        %v389 = vpop.f32.mrb[0].mxu0
        %v390 = vadd.f32 %v267, %v389
        %v391 = vpop.f32.mrb[0].mxu0
        %392 = vmatprep.mubr.f32.mxu0 0.0
        %393 = vmatmul.mubr.f32.gmra.mrb[0].mxu0 %v277
        %v394 = vpop.f32.mrb[0].mxu0
        %v395 = vadd.f32 %v267, %v394
        %v396 = vpop.f32.mrb[0].mxu0
        %397 = vmatprep.mubr.f32.mxu0 0.0
        %398 = vmatmul.mubr.f32.gmra.mrb[0].mxu0 %v280
        %v399 = vpop.f32.mrb[0].mxu0
        %v400 = vadd.f32 %v267, %v399
        %v401 = vpop.f32.mrb[0].mxu0
        %402 = vmatprep.mubr.f32.mxu0 0.0
        %403 = vmatmul.mubr.f32.gmra.mrb[0].mxu0 %v283
        %v404 = vpop.f32.mrb[0].mxu0
        %v405 = vadd.f32 %v267, %v404
        %v406 = vpop.f32.mrb[0].mxu0
        %407 = vmatprep.mubr.f32.mxu0 0.0
        %408 = vmatmul.mubr.f32.gmra.mrb[0].mxu0 %v286
        %v409 = vpop.f32.mrb[0].mxu0
        %v410 = vadd.f32 %v267, %v409
        %v411 = vpop.f32.mrb[0].mxu0
        %412 = vmatprep.mubr.f32.mxu0 0.0
        %413 = vmatmul.mubr.f32.gmra.mrb[0].mxu0 %v289
        %v414 = vpop.f32.mrb[0].mxu0
        %v415 = vadd.f32 %v267, %v414
        %v416 = vpop.f32.mrb[0].mxu0
        %417 = vmatprep.mubr.f32.mxu0 0.0
        %418 = vmatmul.mubr.f32.gmra.mrb[0].mxu0 %v292
        %v419 = vpop.f32.mrb[0].mxu0
        %v420 = vadd.f32 %v267, %v419
        %v421 = vpop.f32.mrb[0].mxu0
        %422 = vmatprep.mubr.f32.mxu0 0.0
        %423 = vmatmul.mubr.f32.gmra.mrb[0].mxu0 %v295
        %v424 = vpop.f32.mrb[0].mxu0
        %v425 = vadd.f32 %v267, %v424
        %v426 = vpop.f32.mrb[0].mxu0
        %427 = vmatprep.mubr.f32.mxu0 0.0
        %428 = vmatmul.mubr.f32.gmra.mrb[0].mxu0 %v298
        %v429 = vpop.f32.mrb[0].mxu0
        %v430 = vadd.f32 %v267, %v429
        %v431 = vpop.f32.mrb[0].mxu0
        %432 = vmatprep.mubr.f32.mxu0 0.0
        %433 = vmatmul.mubr.f32.gmra.mrb[0].mxu0 %v301
        %v434 = vpop.f32.mrb[0].mxu0
        %v435 = vadd.f32 %v267, %v434
        %v436 = vpop.f32.mrb[0].mxu0
        %437 = vmatprep.mubr.f32.mxu0 0.0
        %438 = vmatmul.mubr.f32.gmra.mrb[0].mxu0 %v304
        %v439 = vpop.f32.mrb[0].mxu0
        %v440 = vadd.f32 %v267, %v439
        %v441 = vpop.f32.mrb[0].mxu0
        %442 = vmatprep.mubr.f32.mxu0 0.0
        %443 = vmatmul.mubr.f32.gmra.mrb[0].mxu0 %v307
        %v444 = vpop.f32.mrb[0].mxu0
        %v445 = vadd.f32 %v267, %v444
        %v446 = vpop.f32.mrb[0].mxu0
        %447 = vmatprep.mubr.f32.mxu0 0.0
        %448 = vmatmul.mubr.f32.gmra.mrb[0].mxu0 %v310
        %v449 = vpop.f32.mrb[0].mxu0
        %v450 = vadd.f32 %v267, %v449
        %v451 = vpop.f32.mrb[0].mxu0
        %452 = vmatprep.mubr.f32.mxu0 0.0
        %453 = vmatmul.mubr.f32.gmra.mrb[0].mxu0 %v313
        %v454 = vpop.f32.mrb[0].mxu0
        %v455 = vadd.f32 %v267, %v454
        %v456 = vpop.f32.mrb[0].mxu0
        %457 = vmatprep.mubr.f32.mxu0 0.0
        %458 = vmatmul.mubr.f32.gmra.mrb[0].mxu0 %v316
        %v459 = vpop.f32.mrb[0].mxu0
        %v460 = vadd.f32 %v267, %v459
        %v461 = vpop.f32.mrb[0].mxu0
        %462 = vdwg.mxu0
        %463 = vmax.xlane.f32.xlu0 %v385
        %v464 = vpop.xlane.xlu0 %463
        %465 = vmax.xlane.f32.xlu0 %v390
        %v466 = vpop.xlane.xlu0 %465
        %467 = vmax.xlane.f32.xlu0 %v395
        %v468 = vpop.xlane.xlu0 %467
        %469 = vmax.xlane.f32.xlu0 %v400
        %v470 = vpop.xlane.xlu0 %469
        %471 = vmax.xlane.f32.xlu0 %v405
        %v472 = vpop.xlane.xlu0 %471
        %473 = vmax.xlane.f32.xlu0 %v410
        %v474 = vpop.xlane.xlu0 %473
        %475 = vmax.xlane.f32.xlu0 %v415
        %v476 = vpop.xlane.xlu0 %475
        %477 = vmax.xlane.f32.xlu0 %v420
        %v478 = vpop.xlane.xlu0 %477
        %479 = vmax.xlane.f32.xlu0 %v425
        %v480 = vpop.xlane.xlu0 %479
        %481 = vmax.xlane.f32.xlu0 %v430
        %v482 = vpop.xlane.xlu0 %481
        %483 = vmax.xlane.f32.xlu0 %v435
        %v484 = vpop.xlane.xlu0 %483
        %485 = vmax.xlane.f32.xlu0 %v440
        %v486 = vpop.xlane.xlu0 %485
        %487 = vmax.xlane.f32.xlu0 %v445
        %v488 = vpop.xlane.xlu0 %487
        %489 = vmax.xlane.f32.xlu0 %v450
        %v490 = vpop.xlane.xlu0 %489
        %491 = vmax.xlane.f32.xlu0 %v455
        %v492 = vpop.xlane.xlu0 %491
        %493 = vmax.xlane.f32.xlu0 %v460
        %v494 = vpop.xlane.xlu0 %493
        %v495 = vsub.f32 %v385, %v464
        %v496 = vsub.f32 %v390, %v466
        %v497 = vsub.f32 %v395, %v468
        %v498 = vsub.f32 %v400, %v470
        %v499 = vsub.f32 %v405, %v472
        %v500 = vsub.f32 %v410, %v474
        %v501 = vsub.f32 %v415, %v476
        %v502 = vsub.f32 %v420, %v478
        %v503 = vsub.f32 %v425, %v480
        %v504 = vsub.f32 %v430, %v482
        %v505 = vsub.f32 %v435, %v484
        %v506 = vsub.f32 %v440, %v486
        %v507 = vsub.f32 %v445, %v488
        %v508 = vsub.f32 %v450, %v490
        %v509 = vsub.f32 %v455, %v492
        %v510 = vsub.f32 %v460, %v494
        %v511 = vmul.f32 %v495, 1.442695
        %v512 = vpow.pop %v511
        %v513 = vmul.f32 %v496, 1.442695
        %v514 = vpow.pop %v513
        %v515 = vmul.f32 %v497, 1.442695
        %v516 = vpow.pop %v515
        %v517 = vmul.f32 %v498, 1.442695
        %v518 = vpow.pop %v517
        %v519 = vmul.f32 %v499, 1.442695
        %v520 = vpow.pop %v519
        %v521 = vmul.f32 %v500, 1.442695
        %v522 = vpow.pop %v521
        %v523 = vmul.f32 %v501, 1.442695
        %v524 = vpow.pop %v523
        %v525 = vmul.f32 %v502, 1.442695
        %v526 = vpow.pop %v525
        %v527 = vmul.f32 %v503, 1.442695
        %v528 = vpow.pop %v527
        %v529 = vmul.f32 %v504, 1.442695
        %v530 = vpow.pop %v529
        %v531 = vmul.f32 %v505, 1.442695
        %v532 = vpow.pop %v531
        %v533 = vmul.f32 %v506, 1.442695
        %v534 = vpow.pop %v533
        %v535 = vmul.f32 %v507, 1.442695
        %v536 = vpow.pop %v535
        %v537 = vmul.f32 %v508, 1.442695
        %v538 = vpow.pop %v537
        %v539 = vmul.f32 %v509, 1.442695
        %v540 = vpow.pop %v539
        %v541 = vmul.f32 %v510, 1.442695
        %v542 = vpow.pop %v541
        %543 = vadd.xlane.f32.xlu0 %v512
        %v544 = vpop.xlane.xlu0 %543
        %545 = vadd.xlane.f32.xlu0 %v514
        %v546 = vpop.xlane.xlu0 %545
        %547 = vadd.xlane.f32.xlu0 %v516
        %v548 = vpop.xlane.xlu0 %547
        %549 = vadd.xlane.f32.xlu0 %v518
        %v550 = vpop.xlane.xlu0 %549
        %551 = vadd.xlane.f32.xlu0 %v520
        %v552 = vpop.xlane.xlu0 %551
        %553 = vadd.xlane.f32.xlu0 %v522
        %v554 = vpop.xlane.xlu0 %553
        %555 = vadd.xlane.f32.xlu0 %v524
        %v556 = vpop.xlane.xlu0 %555
        %557 = vadd.xlane.f32.xlu0 %v526
        %v558 = vpop.xlane.xlu0 %557
        %559 = vadd.xlane.f32.xlu0 %v528
        %v560 = vpop.xlane.xlu0 %559
        %561 = vadd.xlane.f32.xlu0 %v530
        %v562 = vpop.xlane.xlu0 %561
        %563 = vadd.xlane.f32.xlu0 %v532
        %v564 = vpop.xlane.xlu0 %563
        %565 = vadd.xlane.f32.xlu0 %v534
        %v566 = vpop.xlane.xlu0 %565
        %567 = vadd.xlane.f32.xlu0 %v536
        %v568 = vpop.xlane.xlu0 %567
        %569 = vadd.xlane.f32.xlu0 %v538
        %v570 = vpop.xlane.xlu0 %569
        %571 = vadd.xlane.f32.xlu0 %v540
        %v572 = vpop.xlane.xlu0 %571
        %573 = vadd.xlane.f32.xlu0 %v542
        %v574 = vpop.xlane.xlu0 %573
        %v575 = vlog2.pop %v544
        %v576 = vmul.f32 %v575, 0.6931472
        %v577 = vlog2.pop %v546
        %v578 = vmul.f32 %v577, 0.6931472
        %v579 = vlog2.pop %v548
        %v580 = vmul.f32 %v579, 0.6931472
        %v581 = vlog2.pop %v550
        %v582 = vmul.f32 %v581, 0.6931472
        %v583 = vlog2.pop %v552
        %v584 = vmul.f32 %v583, 0.6931472
        %v585 = vlog2.pop %v554
        %v586 = vmul.f32 %v585, 0.6931472
        %v587 = vlog2.pop %v556
        %v588 = vmul.f32 %v587, 0.6931472
        %v589 = vlog2.pop %v558
        %v590 = vmul.f32 %v589, 0.6931472
        %v591 = vlog2.pop %v560
        %v592 = vmul.f32 %v591, 0.6931472
        %v593 = vlog2.pop %v562
        %v594 = vmul.f32 %v593, 0.6931472
        %v595 = vlog2.pop %v564
        %v596 = vmul.f32 %v595, 0.6931472
        %v597 = vlog2.pop %v566
        %v598 = vmul.f32 %v597, 0.6931472
        %v599 = vlog2.pop %v568
        %v600 = vmul.f32 %v599, 0.6931472
        %v601 = vlog2.pop %v570
        %v602 = vmul.f32 %v601, 0.6931472
        %v603 = vlog2.pop %v572
        %v604 = vmul.f32 %v603, 0.6931472
        %v605 = vlog2.pop %v574
        %v606 = vmul.f32 %v605, 0.6931472
        %v607 = vadd.f32 %v464, %v576
        %v608 = vadd.f32 %v466, %v578
        %v609 = vadd.f32 %v468, %v580
        %v610 = vadd.f32 %v470, %v582
        %v611 = vadd.f32 %v472, %v584
        %v612 = vadd.f32 %v474, %v586
        %v613 = vadd.f32 %v476, %v588
        %v614 = vadd.f32 %v478, %v590
        %v615 = vadd.f32 %v480, %v592
        %v616 = vadd.f32 %v482, %v594
        %v617 = vadd.f32 %v484, %v596
        %v618 = vadd.f32 %v486, %v598
        %v619 = vadd.f32 %v488, %v600
        %v620 = vadd.f32 %v490, %v602
        %v621 = vadd.f32 %v492, %v604
        %v622 = vadd.f32 %v494, %v606
        %v623 = vld [vmem:[%s234] sm:$0xff]
        %v624 = vld [vmem:[%s234 + $0x8] sm:$0xff]
        %v625 = vld [vmem:[%s234 + $0x10] sm:$0xff]
        %v626 = vld [vmem:[%s234 + $0x18] sm:$0xff]
        %v627 = vld [vmem:[%s234 + $0x20] sm:$0xff]
        %v628 = vld [vmem:[%s234 + $0x28] sm:$0xff]
        %v629 = vld [vmem:[%s234 + $0x30] sm:$0xff]
        %v630 = vld [vmem:[%s234 + $0x38] sm:$0xff]
        %v631 = vld [vmem:[%s234 + $0x40] sm:$0xff]
        %v632 = vld [vmem:[%s234 + $0x48] sm:$0xff]
        %v633 = vld [vmem:[%s234 + $0x50] sm:$0xff]
        %v634 = vld [vmem:[%s234 + $0x58] sm:$0xff]
        %v635 = vld [vmem:[%s234 + $0x60] sm:$0xff]
        %v636 = vld [vmem:[%s234 + $0x68] sm:$0xff]
        %v637 = vld [vmem:[%s234 + $0x70] sm:$0xff]
        %v638 = vld [vmem:[%s234 + $0x78] sm:$0xff]
        %v639 = vlaneseq
        %v640 = vand.u32 %v639, 127
        %641 = vset.pattern.permute.xlu0 0
        %642 = vperm.xlu0 %641, %v623
        %v643 = vpop.permute.xlu0 %642
        %644 = vset.pattern.permute.xlu0 0
        %645 = vperm.xlu0 %644, %v624
        %v646 = vpop.permute.xlu0 %645
        %647 = vset.pattern.permute.xlu0 0
        %648 = vperm.xlu0 %647, %v625
        %v649 = vpop.permute.xlu0 %648
        %650 = vset.pattern.permute.xlu0 0
        %651 = vperm.xlu0 %650, %v626
        %v652 = vpop.permute.xlu0 %651
        %653 = vset.pattern.permute.xlu0 0
        %654 = vperm.xlu0 %653, %v627
        %v655 = vpop.permute.xlu0 %654
        %656 = vset.pattern.permute.xlu0 0
        %657 = vperm.xlu0 %656, %v628
        %v658 = vpop.permute.xlu0 %657
        %659 = vset.pattern.permute.xlu0 0
        %660 = vperm.xlu0 %659, %v629
        %v661 = vpop.permute.xlu0 %660
        %662 = vset.pattern.permute.xlu0 0
        %663 = vperm.xlu0 %662, %v630
        %v664 = vpop.permute.xlu0 %663
        %665 = vset.pattern.permute.xlu0 0
        %666 = vperm.xlu0 %665, %v631
        %v667 = vpop.permute.xlu0 %666
        %668 = vset.pattern.permute.xlu0 0
        %669 = vperm.xlu0 %668, %v632
        %v670 = vpop.permute.xlu0 %669
        %671 = vset.pattern.permute.xlu0 0
        %672 = vperm.xlu0 %671, %v633
        %v673 = vpop.permute.xlu0 %672
        %674 = vset.pattern.permute.xlu0 0
        %675 = vperm.xlu0 %674, %v634
        %v676 = vpop.permute.xlu0 %675
        %677 = vset.pattern.permute.xlu0 0
        %678 = vperm.xlu0 %677, %v635
        %v679 = vpop.permute.xlu0 %678
        %680 = vset.pattern.permute.xlu0 0
        %681 = vperm.xlu0 %680, %v636
        %v682 = vpop.permute.xlu0 %681
        %683 = vset.pattern.permute.xlu0 0
        %684 = vperm.xlu0 %683, %v637
        %v685 = vpop.permute.xlu0 %684
        %686 = vset.pattern.permute.xlu0 0
        %687 = vperm.xlu0 %686, %v638
        %v688 = vpop.permute.xlu0 %687
        %vm689 = vcmp.eq.s32.totalorder %v640, %v643
        %vm690 = vcmp.eq.s32.totalorder %v640, %v646
        %vm691 = vcmp.eq.s32.totalorder %v640, %v649
        %vm692 = vcmp.eq.s32.totalorder %v640, %v652
        %vm693 = vcmp.eq.s32.totalorder %v640, %v655
        %vm694 = vcmp.eq.s32.totalorder %v640, %v658
        %vm695 = vcmp.eq.s32.totalorder %v640, %v661
        %vm696 = vcmp.eq.s32.totalorder %v640, %v664
        %vm697 = vcmp.eq.s32.totalorder %v640, %v667
        %vm698 = vcmp.eq.s32.totalorder %v640, %v670
        %vm699 = vcmp.eq.s32.totalorder %v640, %v673
        %vm700 = vcmp.eq.s32.totalorder %v640, %v676
        %vm701 = vcmp.eq.s32.totalorder %v640, %v679
        %vm702 = vcmp.eq.s32.totalorder %v640, %v682
        %vm703 = vcmp.eq.s32.totalorder %v640, %v685
        %vm704 = vcmp.eq.s32.totalorder %v640, %v688
        %v705 = vsel %vm689, %v385, 0.0
        %v706 = vsel %vm690, %v390, 0.0
        %v707 = vsel %vm691, %v395, 0.0
        %v708 = vsel %vm692, %v400, 0.0
        %v709 = vsel %vm693, %v405, 0.0
        %v710 = vsel %vm694, %v410, 0.0
        %v711 = vsel %vm695, %v415, 0.0
        %v712 = vsel %vm696, %v420, 0.0
        %v713 = vsel %vm697, %v425, 0.0
        %v714 = vsel %vm698, %v430, 0.0
        %v715 = vsel %vm699, %v435, 0.0
        %v716 = vsel %vm700, %v440, 0.0
        %v717 = vsel %vm701, %v445, 0.0
        %v718 = vsel %vm702, %v450, 0.0
        %v719 = vsel %vm703, %v455, 0.0
        %v720 = vsel %vm704, %v460, 0.0
        %721 = vadd.xlane.f32.xlu0 %v705
        %v722 = vpop.xlane.xlu0 %721
        %723 = vadd.xlane.f32.xlu0 %v706
        %v724 = vpop.xlane.xlu0 %723
        %725 = vadd.xlane.f32.xlu0 %v707
        %v726 = vpop.xlane.xlu0 %725
        %727 = vadd.xlane.f32.xlu0 %v708
        %v728 = vpop.xlane.xlu0 %727
        %729 = vadd.xlane.f32.xlu0 %v709
        %v730 = vpop.xlane.xlu0 %729
        %731 = vadd.xlane.f32.xlu0 %v710
        %v732 = vpop.xlane.xlu0 %731
        %733 = vadd.xlane.f32.xlu0 %v711
        %v734 = vpop.xlane.xlu0 %733
        %735 = vadd.xlane.f32.xlu0 %v712
        %v736 = vpop.xlane.xlu0 %735
        %737 = vadd.xlane.f32.xlu0 %v713
        %v738 = vpop.xlane.xlu0 %737
        %739 = vadd.xlane.f32.xlu0 %v714
        %v740 = vpop.xlane.xlu0 %739
        %741 = vadd.xlane.f32.xlu0 %v715
        %v742 = vpop.xlane.xlu0 %741
        %743 = vadd.xlane.f32.xlu0 %v716
        %v744 = vpop.xlane.xlu0 %743
        %745 = vadd.xlane.f32.xlu0 %v717
        %v746 = vpop.xlane.xlu0 %745
        %747 = vadd.xlane.f32.xlu0 %v718
        %v748 = vpop.xlane.xlu0 %747
        %749 = vadd.xlane.f32.xlu0 %v719
        %v750 = vpop.xlane.xlu0 %749
        %751 = vadd.xlane.f32.xlu0 %v720
        %v752 = vpop.xlane.xlu0 %751
        %vm753 = vcmp.ge.s32.totalorder %v623, 0
        %vm754 = vcmp.ge.s32.totalorder %v624, 0
        %vm755 = vcmp.ge.s32.totalorder %v625, 0
        %vm756 = vcmp.ge.s32.totalorder %v626, 0
        %vm757 = vcmp.ge.s32.totalorder %v627, 0
        %vm758 = vcmp.ge.s32.totalorder %v628, 0
        %vm759 = vcmp.ge.s32.totalorder %v629, 0
        %vm760 = vcmp.ge.s32.totalorder %v630, 0
        %vm761 = vcmp.ge.s32.totalorder %v631, 0
        %vm762 = vcmp.ge.s32.totalorder %v632, 0
        %vm763 = vcmp.ge.s32.totalorder %v633, 0
        %vm764 = vcmp.ge.s32.totalorder %v634, 0
        %vm765 = vcmp.ge.s32.totalorder %v635, 0
        %vm766 = vcmp.ge.s32.totalorder %v636, 0
        %vm767 = vcmp.ge.s32.totalorder %v637, 0
        %vm768 = vcmp.ge.s32.totalorder %v638, 0
        %v769 = vsel %vm753, 1, 0
        %v770 = vsel %vm754, 1, 0
        %v771 = vsel %vm755, 1, 0
        %v772 = vsel %vm756, 1, 0
        %v773 = vsel %vm757, 1, 0
        %v774 = vsel %vm758, 1, 0
        %v775 = vsel %vm759, 1, 0
        %v776 = vsel %vm760, 1, 0
        %v777 = vsel %vm761, 1, 0
        %v778 = vsel %vm762, 1, 0
        %v779 = vsel %vm763, 1, 0
        %v780 = vsel %vm764, 1, 0
        %v781 = vsel %vm765, 1, 0
        %v782 = vsel %vm766, 1, 0
        %v783 = vsel %vm767, 1, 0
        %v784 = vsel %vm768, 1, 0
        %v785 = vcvt.s32.f32 %v769
        %v786 = vcvt.s32.f32 %v770
        %v787 = vcvt.s32.f32 %v771
        %v788 = vcvt.s32.f32 %v772
        %v789 = vcvt.s32.f32 %v773
        %v790 = vcvt.s32.f32 %v774
        %v791 = vcvt.s32.f32 %v775
        %v792 = vcvt.s32.f32 %v776
        %v793 = vcvt.s32.f32 %v777
        %v794 = vcvt.s32.f32 %v778
        %v795 = vcvt.s32.f32 %v779
        %v796 = vcvt.s32.f32 %v780
        %v797 = vcvt.s32.f32 %v781
        %v798 = vcvt.s32.f32 %v782
        %v799 = vcvt.s32.f32 %v783
        %v800 = vcvt.s32.f32 %v784
        %v801 = vsub.f32 %v607, %v722
        %v802 = vsub.f32 %v608, %v724
        %v803 = vsub.f32 %v609, %v726
        %v804 = vsub.f32 %v610, %v728
        %v805 = vsub.f32 %v611, %v730
        %v806 = vsub.f32 %v612, %v732
        %v807 = vsub.f32 %v613, %v734
        %v808 = vsub.f32 %v614, %v736
        %v809 = vsub.f32 %v615, %v738
        %v810 = vsub.f32 %v616, %v740
        %v811 = vsub.f32 %v617, %v742
        %v812 = vsub.f32 %v618, %v744
        %v813 = vsub.f32 %v619, %v746
        %v814 = vsub.f32 %v620, %v748
        %v815 = vsub.f32 %v621, %v750
        %v816 = vsub.f32 %v622, %v752
        %v817 = vmul.f32 %v801, %v785
        %v818 = vmul.f32 %v802, %v786
        %v819 = vmul.f32 %v803, %v787
        %v820 = vmul.f32 %v804, %v788
        %v821 = vmul.f32 %v805, %v789
        %v822 = vmul.f32 %v806, %v790
        %v823 = vmul.f32 %v807, %v791
        %v824 = vmul.f32 %v808, %v792
        %v825 = vmul.f32 %v809, %v793
        %v826 = vmul.f32 %v810, %v794
        %v827 = vmul.f32 %v811, %v795
        %v828 = vmul.f32 %v812, %v796
        %v829 = vmul.f32 %v813, %v797
        %v830 = vmul.f32 %v814, %v798
        %v831 = vmul.f32 %v815, %v799
        %v832 = vmul.f32 %v816, %v800
        %v833 = vld [vmem:[#allocation3] sm:$0x1]
        %vm834 = vcmask 7168
        %v835 = vsel %vm834, %v817, 0.0
        %v836 = vsel %vm834, %v818, 0.0
        %v837 = vadd.f32 %v835, %v836
        %v838 = vsel %vm834, %v819, 0.0
        %v839 = vadd.f32 %v837, %v838
        %v840 = vsel %vm834, %v820, 0.0
        %v841 = vadd.f32 %v839, %v840
        %v842 = vsel %vm834, %v821, 0.0
        %v843 = vadd.f32 %v841, %v842
        %v844 = vsel %vm834, %v822, 0.0
        %v845 = vadd.f32 %v843, %v844
        %v846 = vsel %vm834, %v823, 0.0
        %v847 = vadd.f32 %v845, %v846
        %v848 = vsel %vm834, %v824, 0.0
        %v849 = vadd.f32 %v847, %v848
        %v850 = vsel %vm834, %v825, 0.0
        %v851 = vadd.f32 %v849, %v850
        %v852 = vsel %vm834, %v826, 0.0
        %v853 = vadd.f32 %v851, %v852
        %v854 = vsel %vm834, %v827, 0.0
        %v855 = vadd.f32 %v853, %v854
        %v856 = vsel %vm834, %v828, 0.0
        %v857 = vadd.f32 %v855, %v856
        %v858 = vsel %vm834, %v829, 0.0
        %v859 = vadd.f32 %v857, %v858
        %v860 = vsel %vm834, %v830, 0.0
        %v861 = vadd.f32 %v859, %v860
        %v862 = vsel %vm834, %v831, 0.0
        %v863 = vadd.f32 %v861, %v862
        %v864 = vsel %vm834, %v832, 0.0
        %v865 = vadd.f32 %v863, %v864
        %866 = vadd.xlane.f32.xlu0 %v865
        %v867 = vpop.xlane.xlu0 %866
        %v868 = vrot.slane %v867, 4
        %v869 = vadd.f32 %v867, %v868
        %v870 = vrot.slane %v869, 2
        %v871 = vadd.f32 %v869, %v870
        %v872 = vrot.slane %v871, 1
        %v873 = vadd.f32 %v871, %v872
        %s874 = vtos %v873
        %v875 = vstv %s874
        %v876 = vadd.f32 %v833, %v875
        %vm877 = vcmask 0
        %878 = vst.msk [vmem:[#allocation3] sm:$0x1] %vm877, %v876
        %p879 = scmp.eq.s32.totalorder %s18, 1
        // Predicated region
        $region45: #{tpu_custom_call.1} parent=39 // pred_check
          %p880 = pneg %p879
        $region46: #{tpu_custom_call.1} parent=39 // pred_check_branch
          %882 = sbr.rel (%p880) target = $region48
        $region47: #{tpu_custom_call.1} parent=39 // pred_region
          %v883 = vld [vmem:[#allocation3] sm:$0x1]
          %s884 = sld [smem:[#allocation2]]
          %v885 = vstv %s884
          %v886 = vmul.f32 %v883, %v885
          %887 = vst.msk [vmem:[#allocation3] sm:$0x1] %vm877, %v886
        $region48: #{tpu_custom_call.1} parent=39 // pred_fallthru
          _
        // Predicated region
        $region49: #{tpu_custom_call.1} parent=39 // pred_check
          %p888 = pneg %p146
        $region50: #{tpu_custom_call.1} parent=39 // pred_check_branch
          %890 = sbr.rel (%p888) target = $region52
        $region51: #{tpu_custom_call.1} parent=39 // pred_region
          %s892 = ssub.s32 16, 16
          %893 = vsyncadd [#allocation4], %s892
          %s895 = sshll.u32 [#allocation3], 4
          %s896 = int_to_ptr.vmem [resolvable:$true] %s895
          %898 = dma.vmem_to_hbm [thread:$0]  %s896, 16, %s5, [#allocation4]
        $region52: #{tpu_custom_call.1} parent=39 // pred_fallthru
          _
        // Predicated region
        $region53: #{tpu_custom_call.1} parent=39 // pred_check
          %p899 = pneg %p146
        $region54: #{tpu_custom_call.1} parent=39 // pred_check_branch
          %901 = sbr.rel (%p899) target = $region56
        $region55: #{tpu_custom_call.1} parent=39 // pred_region
          %902 = dma.done [#allocation4], 16
        $region56: #{tpu_custom_call.1} parent=39 // pred_fallthru
          _
      $region40: #{tpu_custom_call.1} parent=5 // pred_fallthru
        _
      %p903 = scmp.le.s32.totalorder 2, %s13
      // Predicated region
      $region57: #{tpu_custom_call.1} parent=5 // pred_check
        %p904 = pneg %p903
      $region58: #{tpu_custom_call.1} parent=5 // pred_check_branch
        %906 = sbr.rel (%p904) target = $region60
      $region59: #{tpu_custom_call.1} parent=5 // pred_region
        %s907 = ssub.s32 %s13, 2
      $region60: #{tpu_custom_call.1} parent=5 // pred_fallthru
        _
    $region6: #{tpu_custom_call.1} parent=1 // loop_footer
      %s17 = sadd.s32 1, %s13
    $region7: #{tpu_custom_call.1} parent=1 // loop_footer_branch
      %12 = sbr.rel target = $region3
    $region8: #{tpu_custom_call.1} parent=1 // loop_exit
      _
    %908 = vsyncpa [#allocation4], 1
    %s909 = scalar_lea.sflag [#allocation4], 1
    %910 = vsyncpa %s909, 1

</llo_original>
